<compile_context>
chip_gen: v5e
topology: v5e:2x2
jax: 0.10.0
libtpu: 0.0.40
codegen_flags: <defaults>
</compile_context>

<pallas_src>
import numpy as np
import jax
import jax.numpy as jnp
from jax.experimental import pallas as pl
from jax.experimental.pallas import tpu as pltpu


def _round_up(x, m):
    return ((int(x) + m - 1) // m) * m


def _pow2_bucket(x):
    x = int(max(x, 1))
    return 1 << (x - 1).bit_length()


def _pow2_floor(x):
    x = int(max(x, 1))
    return 1 << (x.bit_length() - 1)


def _make_centroid_kernel(n_coords):
    """Kernel over one (ligand-block, atom-block) grid cell.

    inv_n_ref           : (1, TB)              per-ligand 1 / n_atoms.
    pred_ref / true_ref : (n_coords, TK, TB)   coords x atoms(sublane) x ligands(lane).
    dist_ref            : (1, TB)              per-ligand centroid distance.
    acc_refs            : n_coords x (1, TB)   per-plane running atom sums of (pred - true).
    """

    def kernel(inv_n_ref, pred_ref, true_ref, dist_ref, *acc_refs):
        k = pl.program_id(1)

        @pl.when(k == 0)
        def _init():
            for a in acc_refs:
                a[...] = jnp.zeros_like(a)

        # Per-coordinate-plane sublane (atom-axis) reduction -> lane-dense rows.
        for c in range(n_coords):
            s = jnp.sum(pred_ref[c] - true_ref[c], axis=0, keepdims=True)  # (1, TB)
            acc_refs[c][...] += s

        @pl.when(k == pl.num_programs(1) - 1)
        def _finalize():
            sq = acc_refs[0][...] * acc_refs[0][...]
            for c in range(1, n_coords):
                sq = sq + acc_refs[c][...] * acc_refs[c][...]
            # || (sum(pred) - sum(true)) / n ||_2 == sqrt(sq) / n
            dist_ref[...] = jnp.sqrt(sq) * inv_n_ref[...]

    return kernel


def centroid_dist(ligs_coords_pred, ligs_coords):
    """Pallas implementation of CentroidDist.forward for lists of (N_i, 3) arrays."""
    assert len(ligs_coords_pred) == len(ligs_coords)
    B = len(ligs_coords_pred)
    if B == 0:
        return jnp.float32(np.nan)  # torch: mean of empty tensor -> nan

    lens_p = np.array([int(np.shape(x)[0]) for x in ligs_coords_pred], np.int64)
    lens_t = np.array([int(np.shape(x)[0]) for x in ligs_coords], np.int64)
    assert np.array_equal(lens_p, lens_t), "pred/true ligand atom counts must match"

    n_coords = int(np.shape(ligs_coords_pred[0])[1])  # 3 for real ligands
    max_n = max(int(lens_p.max()), 1)

    # Bucketed padding (pow2) so variable-size batches reuse the same compile.
    n_pad = _pow2_bucket(_round_up(max_n, 8))      # atoms  -> sublane axis
    b_pad = _pow2_bucket(_round_up(B, 128))        # ligands -> lane axis

    # Generation-aware VMEM budget (~0.6 x capacity: ~38 MiB on v7x per TC,
    # ~76 MiB on v5e/v6e), half of it for the 2-input x 2-buffer pipeline.
    try:
        vmem_cap = int(pltpu.get_tpu_info().vmem_capacity_bytes)
    except Exception:
        vmem_cap = 64 * 1024 * 1024                # conservative (v7x per-TC)
    vmem_limit = int(min(max(vmem_cap * 6 // 10, 16 * 1024 * 1024),
                         100 * 1024 * 1024))
    block_budget = vmem_limit // 2

    itemsize = 4
    bytes_per_lig_whole = 4 * n_coords * n_pad * itemsize  # 1 ligand, 4 buffers
    max_tb = (block_budget // bytes_per_lig_whole) // 128 * 128

    if max_tb >= 128:
        # Whole ligands per block; tile only the ligand (lane) axis.
        tk = n_pad
        tb = max(128, _pow2_floor(min(b_pad, max_tb)))   # pow2 -> divides b_pad
        # v7x megacore: keep >= 2 "parallel" grid steps when the batch allows
        # (no effect on tiny batches; harmless on single-TC v5e/v6e).
        if b_pad >= 256 and tb >= b_pad:
            tb = b_pad // 2
    else:
        # Very long ligands: fix tb at one lane tile and tile the atom axis,
        # sized so the double-buffered footprint stays inside the budget.
        tb = 128
        max_tk = max(8, (block_budget // (4 * n_coords * tb * itemsize)) // 8 * 8)
        tk = min(n_pad, _pow2_floor(max_tk))             # pow2 -> divides n_pad

    nb = b_pad // tb
    nk = n_pad // tk

    # Host-side packing with numpy: one dense upload, no traced .at[].set loops.
    def pack(lst):
        buf = np.zeros((n_coords, n_pad, b_pad), np.float32)
        for i, x in enumerate(lst):
            a = np.asarray(x, np.float32)                # (n_i, n_coords)
            if a.shape[0]:
                buf[:, : a.shape[0], i] = a.T
        return jnp.asarray(buf)

    pred = pack(ligs_coords_pred)
    true = pack(ligs_coords)

    # Per-ligand 1/n (empty ligands -> NaN, matching the torch reference;
    # padded ligand slots -> 0, they are sliced away below).
    inv = np.zeros((1, b_pad), np.float32)
    inv[0, :B] = np.where(lens_p > 0,
                          1.0 / np.maximum(lens_p, 1),
                          np.nan).astype(np.float32)
    inv = jnp.asarray(inv)

    kernel = _make_centroid_kernel(n_coords)

    dists = pl.pallas_call(
        kernel,
        out_shape=jax.ShapeDtypeStruct((1, b_pad), jnp.float32),
        grid=(nb, nk),
        in_specs=[
            pl.BlockSpec((1, tb), lambda i, k: (0, i)),               # inv_n
            pl.BlockSpec((n_coords, tk, tb), lambda i, k: (0, k, i)),  # pred
            pl.BlockSpec((n_coords, tk, tb), lambda i, k: (0, k, i)),  # true
        ],
        out_specs=pl.BlockSpec((1, tb), lambda i, k: (0, i)),
        scratch_shapes=[pltpu.VMEM((1, tb), jnp.float32)
                        for _ in range(n_coords)],
        compiler_params=pltpu.CompilerParams(
            dimension_semantics=("parallel", "arbitrary"),
            vmem_limit_bytes=vmem_limit,
        ),
    )(inv, pred, true)

    # TODO(synk): the final tiny mean over <=B scalars stays in JAX (not worth a kernel).
    return jnp.mean(dists[0, :B])


def centroid_dist_ref(ligs_coords_pred, ligs_coords):
    """Pure-JAX reference mirroring the PyTorch module."""
    dists = []
    for p, t in zip(ligs_coords_pred, ligs_coords):
        p = jnp.asarray(p, jnp.float32)
        t = jnp.asarray(t, jnp.float32)
        dists.append(jnp.linalg.norm(p.mean(axis=0) - t.mean(axis=0)))
    return jnp.stack(dists).mean()


if __name__ == "__main__":
    key = jax.random.PRNGKey(0)
    # 4 ligands with varying atom counts, each (N_i, 3), like the torch List[Tensor].
    atom_counts = [5, 8, 6, 7]
    preds, trues = [], []
    for n in atom_counts:
        key, k1, k2 = jax.random.split(key, 3)
        preds.append(jax.random.normal(k1, (n, 3), jnp.float32))
        trues.append(jax.random.normal(k2, (n, 3), jnp.float32))

    result = jax.block_until_ready(centroid_dist(preds, trues))
    expected = jax.block_until_ready(centroid_dist_ref(preds, trues))

    assert jnp.allclose(result, expected, atol=1e-5, rtol=1e-5), (result, expected)
    print("KERNEL_OK")
</pallas_src>

<mosaic_0001>
module attributes {stable_mosaic.version = 11 : i64} {
  func.func @kernel(%arg0: i32, %arg1: i32, %arg2: memref<1x128xf32, #tpu.memory_space<vmem>>, %arg3: memref<3x8x128xf32, #tpu.memory_space<vmem>>, %arg4: memref<3x8x128xf32, #tpu.memory_space<vmem>>, %arg5: memref<1x128xf32, #tpu.memory_space<vmem>>, %arg6: memref<1x128xf32, #tpu.memory_space<vmem>>, %arg7: memref<1x128xf32, #tpu.memory_space<vmem>>, %arg8: memref<1x128xf32, #tpu.memory_space<vmem>>) attributes {dimension_semantics = [#tpu.dimension_semantics<parallel>, #tpu.dimension_semantics<arbitrary>], iteration_bounds = array<i64: 1, 1>, scalar_prefetch = 0 : i64, scratch_operands = 3 : i64, tpu.core_type = #tpu.core_type<tc>, window_params = [{transform_indices = @transform_0, window_bounds = array<i64: 1, 128>}, {transform_indices = @transform_1, window_bounds = array<i64: 3, 8, 128>}, {transform_indices = @transform_2, window_bounds = array<i64: 3, 8, 128>}, {transform_indices = @transform_3, window_bounds = array<i64: 1, 128>}]} {
    %c0_i32 = arith.constant 0 : i32
    %0 = arith.cmpi eq, %arg1, %c0_i32 : i32
    %1 = arith.extui %0 : i1 to i32
    %c0_i32_0 = arith.constant 0 : i32
    %2 = arith.cmpi ne, %1, %c0_i32_0 : i32
    scf.if %2 {
      %cst_32 = arith.constant 0.000000e+00 : f32
      %36 = vector.broadcast %cst_32 : f32 to vector<1x128xf32>
      %c0_33 = arith.constant 0 : index
      %c0_34 = arith.constant 0 : index
      %37 = vector.load %arg6[%c0_33, %c0_34] : memref<1x128xf32, #tpu.memory_space<vmem>>, vector<1x128xf32>
      tpu.vector_store %arg6[%c0_33, %c0_34], %36 {strides = array<i32>} : memref<1x128xf32, #tpu.memory_space<vmem>>, vector<1x128xf32>,
      %cst_35 = arith.constant 0.000000e+00 : f32
      %38 = vector.broadcast %cst_35 : f32 to vector<1x128xf32>
      %c0_36 = arith.constant 0 : index
      %c0_37 = arith.constant 0 : index
      %39 = vector.load %arg7[%c0_36, %c0_37] : memref<1x128xf32, #tpu.memory_space<vmem>>, vector<1x128xf32>
      tpu.vector_store %arg7[%c0_36, %c0_37], %38 {strides = array<i32>} : memref<1x128xf32, #tpu.memory_space<vmem>>, vector<1x128xf32>,
      %cst_38 = arith.constant 0.000000e+00 : f32
      %40 = vector.broadcast %cst_38 : f32 to vector<1x128xf32>
      %c0_39 = arith.constant 0 : index
      %c0_40 = arith.constant 0 : index
      %41 = vector.load %arg8[%c0_39, %c0_40] : memref<1x128xf32, #tpu.memory_space<vmem>>, vector<1x128xf32>
      tpu.vector_store %arg8[%c0_39, %c0_40], %40 {strides = array<i32>} : memref<1x128xf32, #tpu.memory_space<vmem>>, vector<1x128xf32>,
    } else {
    }
    %c0 = arith.constant 0 : index
    %c0_1 = arith.constant 0 : index
    %c0_2 = arith.constant 0 : index
    %3 = vector.load %arg3[%c0, %c0_1, %c0_2] : memref<3x8x128xf32, #tpu.memory_space<vmem>>, vector<1x8x128xf32>
    %4 = vector.shape_cast %3 : vector<1x8x128xf32> to vector<8x128xf32>
    %c0_3 = arith.constant 0 : index
    %c0_4 = arith.constant 0 : index
    %c0_5 = arith.constant 0 : index
    %5 = vector.load %arg4[%c0_3, %c0_4, %c0_5] : memref<3x8x128xf32, #tpu.memory_space<vmem>>, vector<1x8x128xf32>
    %6 = vector.shape_cast %5 : vector<1x8x128xf32> to vector<8x128xf32>
    %7 = arith.subf %4, %6 : vector<8x128xf32>
    %cst = arith.constant dense<0.000000e+00> : vector<128xf32>
    %8 = vector.multi_reduction <add>, %7, %cst [0] : vector<8x128xf32> to vector<128xf32>
    %9 = vector.shape_cast %8 : vector<128xf32> to vector<1x128xf32>
    %c0_6 = arith.constant 0 : index
    %c0_7 = arith.constant 0 : index
    %10 = vector.load %arg6[%c0_6, %c0_7] : memref<1x128xf32, #tpu.memory_space<vmem>>, vector<1x128xf32>
    %11 = arith.addf %10, %9 : vector<1x128xf32>
    %c0_8 = arith.constant 0 : index
    %c0_9 = arith.constant 0 : index
    %12 = vector.load %arg6[%c0_8, %c0_9] : memref<1x128xf32, #tpu.memory_space<vmem>>, vector<1x128xf32>
    tpu.vector_store %arg6[%c0_8, %c0_9], %11 {strides = array<i32>} : memref<1x128xf32, #tpu.memory_space<vmem>>, vector<1x128xf32>,
    %c1 = arith.constant 1 : index
    %c0_10 = arith.constant 0 : index
    %c0_11 = arith.constant 0 : index
    %13 = vector.load %arg3[%c1, %c0_10, %c0_11] : memref<3x8x128xf32, #tpu.memory_space<vmem>>, vector<1x8x128xf32>
    %14 = vector.shape_cast %13 : vector<1x8x128xf32> to vector<8x128xf32>
    %c1_12 = arith.constant 1 : index
    %c0_13 = arith.constant 0 : index
    %c0_14 = arith.constant 0 : index
    %15 = vector.load %arg4[%c1_12, %c0_13, %c0_14] : memref<3x8x128xf32, #tpu.memory_space<vmem>>, vector<1x8x128xf32>
    %16 = vector.shape_cast %15 : vector<1x8x128xf32> to vector<8x128xf32>
    %17 = arith.subf %14, %16 : vector<8x128xf32>
    %cst_15 = arith.constant dense<0.000000e+00> : vector<128xf32>
    %18 = vector.multi_reduction <add>, %17, %cst_15 [0] : vector<8x128xf32> to vector<128xf32>
    %19 = vector.shape_cast %18 : vector<128xf32> to vector<1x128xf32>
    %c0_16 = arith.constant 0 : index
    %c0_17 = arith.constant 0 : index
    %20 = vector.load %arg7[%c0_16, %c0_17] : memref<1x128xf32, #tpu.memory_space<vmem>>, vector<1x128xf32>
    %21 = arith.addf %20, %19 : vector<1x128xf32>
    %c0_18 = arith.constant 0 : index
    %c0_19 = arith.constant 0 : index
    %22 = vector.load %arg7[%c0_18, %c0_19] : memref<1x128xf32, #tpu.memory_space<vmem>>, vector<1x128xf32>
    tpu.vector_store %arg7[%c0_18, %c0_19], %21 {strides = array<i32>} : memref<1x128xf32, #tpu.memory_space<vmem>>, vector<1x128xf32>,
    %c2 = arith.constant 2 : index
    %c0_20 = arith.constant 0 : index
    %c0_21 = arith.constant 0 : index
    %23 = vector.load %arg3[%c2, %c0_20, %c0_21] : memref<3x8x128xf32, #tpu.memory_space<vmem>>, vector<1x8x128xf32>
    %24 = vector.shape_cast %23 : vector<1x8x128xf32> to vector<8x128xf32>
    %c2_22 = arith.constant 2 : index
    %c0_23 = arith.constant 0 : index
    %c0_24 = arith.constant 0 : index
    %25 = vector.load %arg4[%c2_22, %c0_23, %c0_24] : memref<3x8x128xf32, #tpu.memory_space<vmem>>, vector<1x8x128xf32>
    %26 = vector.shape_cast %25 : vector<1x8x128xf32> to vector<8x128xf32>
    %27 = arith.subf %24, %26 : vector<8x128xf32>
    %cst_25 = arith.constant dense<0.000000e+00> : vector<128xf32>
    %28 = vector.multi_reduction <add>, %27, %cst_25 [0] : vector<8x128xf32> to vector<128xf32>
    %29 = vector.shape_cast %28 : vector<128xf32> to vector<1x128xf32>
    %c0_26 = arith.constant 0 : index
    %c0_27 = arith.constant 0 : index
    %30 = vector.load %arg8[%c0_26, %c0_27] : memref<1x128xf32, #tpu.memory_space<vmem>>, vector<1x128xf32>
    %31 = arith.addf %30, %29 : vector<1x128xf32>
    %c0_28 = arith.constant 0 : index
    %c0_29 = arith.constant 0 : index
    %32 = vector.load %arg8[%c0_28, %c0_29] : memref<1x128xf32, #tpu.memory_space<vmem>>, vector<1x128xf32>
    tpu.vector_store %arg8[%c0_28, %c0_29], %31 {strides = array<i32>} : memref<1x128xf32, #tpu.memory_space<vmem>>, vector<1x128xf32>,
    %c0_i32_30 = arith.constant 0 : i32
    %33 = arith.cmpi eq, %arg1, %c0_i32_30 : i32
    %34 = arith.extui %33 : i1 to i32
    %c0_i32_31 = arith.constant 0 : i32
    %35 = arith.cmpi ne, %34, %c0_i32_31 : i32
    scf.if %35 {
      %c0_32 = arith.constant 0 : index
      %c0_33 = arith.constant 0 : index
      %36 = vector.load %arg6[%c0_32, %c0_33] : memref<1x128xf32, #tpu.memory_space<vmem>>, vector<1x128xf32>
      %c0_34 = arith.constant 0 : index
      %c0_35 = arith.constant 0 : index
      %37 = vector.load %arg6[%c0_34, %c0_35] : memref<1x128xf32, #tpu.memory_space<vmem>>, vector<1x128xf32>
      %38 = arith.mulf %36, %37 : vector<1x128xf32>
      %c0_36 = arith.constant 0 : index
      %c0_37 = arith.constant 0 : index
      %39 = vector.load %arg7[%c0_36, %c0_37] : memref<1x128xf32, #tpu.memory_space<vmem>>, vector<1x128xf32>
      %c0_38 = arith.constant 0 : index
      %c0_39 = arith.constant 0 : index
      %40 = vector.load %arg7[%c0_38, %c0_39] : memref<1x128xf32, #tpu.memory_space<vmem>>, vector<1x128xf32>
      %41 = arith.mulf %39, %40 : vector<1x128xf32>
      %42 = arith.addf %38, %41 : vector<1x128xf32>
      %c0_40 = arith.constant 0 : index
      %c0_41 = arith.constant 0 : index
      %43 = vector.load %arg8[%c0_40, %c0_41] : memref<1x128xf32, #tpu.memory_space<vmem>>, vector<1x128xf32>
      %c0_42 = arith.constant 0 : index
      %c0_43 = arith.constant 0 : index
      %44 = vector.load %arg8[%c0_42, %c0_43] : memref<1x128xf32, #tpu.memory_space<vmem>>, vector<1x128xf32>
      %45 = arith.mulf %43, %44 : vector<1x128xf32>
      %46 = arith.addf %42, %45 : vector<1x128xf32>
      %47 = math.sqrt %46 : vector<1x128xf32>
      %c0_44 = arith.constant 0 : index
      %c0_45 = arith.constant 0 : index
      %48 = vector.load %arg2[%c0_44, %c0_45] : memref<1x128xf32, #tpu.memory_space<vmem>>, vector<1x128xf32>
      %49 = arith.mulf %47, %48 : vector<1x128xf32>
      %c0_46 = arith.constant 0 : index
      %c0_47 = arith.constant 0 : index
      %50 = vector.load %arg5[%c0_46, %c0_47] : memref<1x128xf32, #tpu.memory_space<vmem>>, vector<1x128xf32>
      tpu.vector_store %arg5[%c0_46, %c0_47], %49 {strides = array<i32>} : memref<1x128xf32, #tpu.memory_space<vmem>>, vector<1x128xf32>,
    } else {
    }
    return
  }
  func.func @transform_0(%arg0: i32, %arg1: i32) -> (i32, i32) {
    %c0_i32 = arith.constant 0 : i32
    %c0_i32_0 = arith.constant 0 : i32
    return %c0_i32, %arg0 : i32, i32
  }
  func.func @transform_1(%arg0: i32, %arg1: i32) -> (i32, i32, i32) {
    %c0_i32 = arith.constant 0 : i32
    %c0_i32_0 = arith.constant 0 : i32
    return %c0_i32, %arg1, %arg0 : i32, i32, i32
  }
  func.func @transform_2(%arg0: i32, %arg1: i32) -> (i32, i32, i32) {
    %c0_i32 = arith.constant 0 : i32
    %c0_i32_0 = arith.constant 0 : i32
    return %c0_i32, %arg1, %arg0 : i32, i32, i32
  }
  func.func @transform_3(%arg0: i32, %arg1: i32) -> (i32, i32) {
    %c0_i32 = arith.constant 0 : i32
    %c0_i32_0 = arith.constant 0 : i32
    return %c0_i32, %arg0 : i32, i32
  }
}

</mosaic_0001>

<llo_original>
// kernel: tpu_custom_call.1
$region0: #{tpu_custom_call.1}
  #allocation0 [shape = 'u32[]', space=smem, size = 0x4, offset = 0x4, fixed_abs, tag = 'smem constant byte address 0x4 - core index']
  #allocation1 [shape = 'u32[72,128]{1,0:T(1,128)}', space=vmem, size = 0x9000, scoped, tag = 'internal scratch']
  #allocation2 [shape = 'f32[1,128]{1,0:T(1,128)}', space=vmem, size = 0x200, scoped, tag = 'scratch operand']
  #allocation3 [shape = 'f32[1,128]{1,0:T(1,128)}', space=vmem, size = 0x200, scoped, tag = 'scratch operand']
  #allocation4 [shape = 'f32[1,128]{1,0:T(1,128)}', space=vmem, size = 0x200, scoped, tag = 'scratch operand']
  %s0 = inlined_call_operand.hbm [shape: f32[1,128], index: 0, kind: input, shape index: {}]
  %s1 = inlined_call_operand.hbm [shape: f32[3,8,128], index: 1, kind: input, shape index: {}]
  %s2 = inlined_call_operand.hbm [shape: f32[3,8,128], index: 2, kind: input, shape index: {}]
  %s3 = inlined_call_operand.hbm [shape: f32[1,128], index: 3, kind: output, shape index: {}]
  %s4 = sld [smem:[#allocation0]]
  $region42: #{tpu_custom_call.1} parent=0
    _
  %s6 = ssub.s32 1, %s4
  %s7 = scalar_select 0, %s6, %s4
  $region1: #{tpu_custom_call.1} parent=0
    #allocation5 [shape = 'u8[512]{0}', space=vmem, size = 0x400, scoped, tag = 'input window, operand 0, single buffered']
    #allocation6 [shape = 's32[1]{0}', space=sflag, size = 0x4, scoped, tag = 'scoped memory for tpu_custom_call.1']
    #allocation7 [shape = 's32[1]{0}', space=sflag, size = 0x4, scoped, tag = 'scoped memory for tpu_custom_call.1']
    #allocation8 [shape = 'u8[12288]{0}', space=vmem, size = 0x3000, scoped, tag = 'input window, operand 1, single buffered']
    #allocation9 [shape = 's32[1]{0}', space=sflag, size = 0x4, scoped, tag = 'scoped memory for tpu_custom_call.1']
    #allocation10 [shape = 'u8[12288]{0}', space=vmem, size = 0x3000, scoped, tag = 'input window, operand 2, single buffered']
    #allocation11 [shape = 'u8[512]{0}', space=vmem, size = 0x400, scoped, tag = 'output window, operand 0, single buffered']
    %8 = vsyncpa [#allocation6], 0
    %9 = vsyncpa [#allocation9], 0
    %10 = vsyncpa [#allocation7], 0
    // Predicated region
    $region2: #{tpu_custom_call.1} parent=1 // pred_check
      _
    $region3: #{tpu_custom_call.1} parent=1 // pred_check_branch
      %12 = sbr.rel (0) target = $region5
    $region4: #{tpu_custom_call.1} parent=1 // pred_region
      %14 = vsyncadd [#allocation6], 0
      %s16 = sshll.u32 %s0, 4
      %s17 = int_to_ptr.hbm [resolvable:$true] %s16
      %s18 = sshll.u32 [#allocation5], 4
      %s19 = int_to_ptr.vmem [resolvable:$true] %s18
      %21 = dma.hbm_to_vmem [thread:$0]  %s17, 16, %s19, [#allocation6]
    $region5: #{tpu_custom_call.1} parent=1 // pred_fallthru
      _
    // Predicated region
    $region6: #{tpu_custom_call.1} parent=1 // pred_check
      _
    $region7: #{tpu_custom_call.1} parent=1 // pred_check_branch
      %23 = sbr.rel (0) target = $region9
    $region8: #{tpu_custom_call.1} parent=1 // pred_region
      %25 = vsyncadd [#allocation9], 0
      %s26 = sshll.u32 %s1, 4
      %s27 = int_to_ptr.hbm [resolvable:$true] %s26
      %s28 = sshll.u32 [#allocation8], 4
      %s29 = int_to_ptr.vmem [resolvable:$true] %s28
      %34 = dma.hbm_to_vmem [thread:$0]  %s27, 384, %s29, [#allocation9], 128, 128, 8
    $region9: #{tpu_custom_call.1} parent=1 // pred_fallthru
      _
    // Predicated region
    $region10: #{tpu_custom_call.1} parent=1 // pred_check
      _
    $region11: #{tpu_custom_call.1} parent=1 // pred_check_branch
      %36 = sbr.rel (0) target = $region13
    $region12: #{tpu_custom_call.1} parent=1 // pred_region
      %38 = vsyncadd [#allocation9], 0
      %s39 = sshll.u32 %s2, 4
      %s40 = int_to_ptr.hbm [resolvable:$true] %s39
      %s41 = sshll.u32 [#allocation10], 4
      %s42 = int_to_ptr.vmem [resolvable:$true] %s41
      %47 = dma.hbm_to_vmem [thread:$0]  %s40, 384, %s42, [#allocation9], 128, 128, 8
    $region13: #{tpu_custom_call.1} parent=1 // pred_fallthru
      _
    // Predicated region
    $region14: #{tpu_custom_call.1} parent=1 // pred_check
      _
    $region15: #{tpu_custom_call.1} parent=1 // pred_check_branch
      %49 = sbr.rel (0) target = $region17
    $region16: #{tpu_custom_call.1} parent=1 // pred_region
      %51 = dma.done [#allocation6], 16
    $region17: #{tpu_custom_call.1} parent=1 // pred_fallthru
      _
    // Predicated region
    $region18: #{tpu_custom_call.1} parent=1 // pred_check
      _
    $region19: #{tpu_custom_call.1} parent=1 // pred_check_branch
      %53 = sbr.rel (0) target = $region21
    $region20: #{tpu_custom_call.1} parent=1 // pred_region
      %55 = dma.done [#allocation9], 384
    $region21: #{tpu_custom_call.1} parent=1 // pred_fallthru
      _
    // Predicated region
    $region22: #{tpu_custom_call.1} parent=1 // pred_check
      _
    $region23: #{tpu_custom_call.1} parent=1 // pred_check_branch
      %57 = sbr.rel (0) target = $region25
    $region24: #{tpu_custom_call.1} parent=1 // pred_region
      %59 = dma.done [#allocation9], 384
    $region25: #{tpu_custom_call.1} parent=1 // pred_fallthru
      _
    %p60 = scmp.eq.s32.totalorder 0, 0
    // Predicated region
    $region26: #{tpu_custom_call.1} parent=1 // pred_check
      %p61 = pneg %p60
    $region27: #{tpu_custom_call.1} parent=1 // pred_check_branch
      %63 = sbr.rel (%p61) target = $region29
    $region28: #{tpu_custom_call.1} parent=1 // pred_region
      %64 = vst [vmem:[#allocation2] sm:$0x1] 0.0
      %65 = vst [vmem:[#allocation3] sm:$0x1] 0.0
      %66 = vst [vmem:[#allocation4] sm:$0x1] 0.0
    $region29: #{tpu_custom_call.1} parent=1 // pred_fallthru
      _
    %v67 = vld [vmem:[#allocation8] sm:$0xff]
    %v68 = vld [vmem:[#allocation10] sm:$0xff]
    %v69 = vsub.f32 %v67, %v68
    %v70 = vrot.slane %v69, 4
    %v71 = vadd.f32 %v69, %v70
    %v72 = vrot.slane %v71, 2
    %v73 = vadd.f32 %v71, %v72
    %v74 = vrot.slane %v73, 1
    %v75 = vadd.f32 %v73, %v74
    %v76 = vld [vmem:[#allocation2] sm:$0x1]
    %v77 = vadd.f32 %v76, %v75
    %78 = vst [vmem:[#allocation2] sm:$0x1] %v77
    %s79 = scalar_lea.vmem [#allocation8], 8
    %v80 = vld [vmem:[%s79] sm:$0xff]
    %s81 = scalar_lea.vmem [#allocation10], 8
    %v82 = vld [vmem:[%s81] sm:$0xff]
    %v83 = vsub.f32 %v80, %v82
    %v84 = vrot.slane %v83, 4
    %v85 = vadd.f32 %v83, %v84
    %v86 = vrot.slane %v85, 2
    %v87 = vadd.f32 %v85, %v86
    %v88 = vrot.slane %v87, 1
    %v89 = vadd.f32 %v87, %v88
    %v90 = vld [vmem:[#allocation3] sm:$0x1]
    %v91 = vadd.f32 %v90, %v89
    %92 = vst [vmem:[#allocation3] sm:$0x1] %v91
    %s93 = scalar_lea.vmem [#allocation8], 16
    %v94 = vld [vmem:[%s93] sm:$0xff]
    %s95 = scalar_lea.vmem [#allocation10], 16
    %v96 = vld [vmem:[%s95] sm:$0xff]
    %v97 = vsub.f32 %v94, %v96
    %v98 = vrot.slane %v97, 4
    %v99 = vadd.f32 %v97, %v98
    %v100 = vrot.slane %v99, 2
    %v101 = vadd.f32 %v99, %v100
    %v102 = vrot.slane %v101, 1
    %v103 = vadd.f32 %v101, %v102
    %v104 = vld [vmem:[#allocation4] sm:$0x1]
    %v105 = vadd.f32 %v104, %v103
    %106 = vst [vmem:[#allocation4] sm:$0x1] %v105
    // Predicated region
    $region30: #{tpu_custom_call.1} parent=1 // pred_check
      %p107 = pneg %p60
    $region31: #{tpu_custom_call.1} parent=1 // pred_check_branch
      %109 = sbr.rel (%p107) target = $region33
    $region32: #{tpu_custom_call.1} parent=1 // pred_region
      %v110 = vld [vmem:[#allocation2] sm:$0x1]
      %v111 = vmul.f32 %v110, %v110
      %v112 = vld [vmem:[#allocation3] sm:$0x1]
      %v113 = vmul.f32 %v112, %v112
      %v114 = vadd.f32 %v111, %v113
      %v115 = vld [vmem:[#allocation4] sm:$0x1]
      %v116 = vmul.f32 %v115, %v115
      %v117 = vadd.f32 %v114, %v116
      %v118 = vrsqrt.pop %v117
      %v119 = vmul.f32 %v118, %v117
      %v120 = vmul.f32 %v119, %v118
      %v121 = vmul.f32 0.5, %v120
      %v122 = vsub.f32 1.5, %v121
      %v123 = vmul.f32 %v118, %v122
      %v124 = vmul.f32 %v117, %v123
      %vm125 = vcmp.eq.f32.partialorder %v117, inf
      %v126 = vsel %vm125, %v117, %v124
      %vm127 = vcmp.eq.f32.partialorder %v117, 0.0
      %v128 = vand.u32 %v117, 2147483648
      %v129 = vsel %vm127, %v128, %v126
      %v130 = vld [vmem:[#allocation5] sm:$0x1]
      %v131 = vmul.f32 %v129, %v130
      %132 = vst [vmem:[#allocation11] sm:$0x1] %v131
    $region33: #{tpu_custom_call.1} parent=1 // pred_fallthru
      _
    // Predicated region
    $region34: #{tpu_custom_call.1} parent=1 // pred_check
      _
    $region35: #{tpu_custom_call.1} parent=1 // pred_check_branch
      %134 = sbr.rel (0) target = $region37
    $region36: #{tpu_custom_call.1} parent=1 // pred_region
      %136 = vsyncadd [#allocation7], 0
      %s138 = sshll.u32 [#allocation11], 4
      %s139 = int_to_ptr.vmem [resolvable:$true] %s138
      %s140 = sshll.u32 %s3, 4
      %s141 = int_to_ptr.hbm [resolvable:$true] %s140
      %143 = dma.vmem_to_hbm [thread:$0]  %s139, 16, %s141, [#allocation7]
    $region37: #{tpu_custom_call.1} parent=1 // pred_fallthru
      _
    // Predicated region
    $region38: #{tpu_custom_call.1} parent=1 // pred_check
      _
    $region39: #{tpu_custom_call.1} parent=1 // pred_check_branch
      %145 = sbr.rel (0) target = $region41
    $region40: #{tpu_custom_call.1} parent=1 // pred_region
      %147 = dma.done [#allocation7], 16
    $region41: #{tpu_custom_call.1} parent=1 // pred_fallthru
      _
    %148 = vsyncpa [#allocation6], 1
    %149 = vsyncpa [#allocation9], 1
    %150 = vsyncpa [#allocation7], 1

</llo_original>
